<compile_context>
chip_gen: v7x
topology: tpu7x:2x2x1
jax: 0.10.0
libtpu: 0.0.40
codegen_flags: <defaults>
</compile_context>

<pallas_src>
import jax
import jax.numpy as jnp
from jax.experimental import pallas as pl
from jax.experimental.pallas import tpu as pltpu

IN_FEATURES = 85
IN_PADDED = 128
HEAD_WIDTH = 8  # 6 action logits + 1 value + 1 zero pad lane


def simplenet_kernel(
    x_ref,
    w1_ref, b1_ref,
    w2_ref, b2_ref,
    w3_ref, b3_ref,
    wh_ref, bh_ref,
    out_ref,
):
    def dense(h, w_ref, b_ref, relu):
        # MXU matmul in the weight dtype (bf16), f32 accumulation; f32 epilogue.
        y = jnp.dot(
            h.astype(w_ref.dtype), w_ref[...], preferred_element_type=jnp.float32
        ) + b_ref[...]
        return jnp.maximum(y, 0.0) if relu else y

    h = dense(x_ref[...], w1_ref, b1_ref, relu=True)   # (TB, 128) @ (128, 128)
    h = dense(h, w2_ref, b2_ref, relu=True)            # (TB, 128) @ (128, 64)
    h = dense(h, w3_ref, b3_ref, relu=True)            # (TB, 64)  @ (64, 32)
    out_ref[...] = dense(h, wh_ref, bh_ref, relu=False)  # (TB, 32) @ (32, 8) fused heads


def simplenet_forward(x, params, *, block_b=512, use_bf16=True):
    """x: (B, 85) float32.  params: dict of (in, out) weights and (1, out) biases.

    Returns (action_logits (B, 6), state_value (B, 1)), both float32.
    """
    B, f_in = x.shape
    assert f_in == IN_FEATURES

    compute_dtype = jnp.bfloat16 if use_bf16 else jnp.float32

    # ---- parameter prep: pad fc1 to a 128-wide K, fuse the two heads ----
    w1 = jnp.pad(params["w1"], ((0, IN_PADDED - IN_FEATURES), (0, 0)))      # (128, 128)
    w_heads = jnp.concatenate(
        [params["wa"], params["wv"], jnp.zeros((32, 1), jnp.float32)], axis=1
    )                                                                        # (32, 8)
    b_heads = jnp.concatenate(
        [params["ba"], params["bv"], jnp.zeros((1, 1), jnp.float32)], axis=1
    )                                                                        # (1, 8)

    w1 = w1.astype(compute_dtype)
    w2 = params["w2"].astype(compute_dtype)
    w3 = params["w3"].astype(compute_dtype)
    w_heads = w_heads.astype(compute_dtype)
    b1, b2, b3 = params["b1"], params["b2"], params["b3"]                    # f32 biases

    # ---- input prep: pad features 85 -> 128, cast, pad batch to the tile ----
    x_pad = jnp.pad(x, ((0, 0), (0, IN_PADDED - IN_FEATURES))).astype(compute_dtype)

    TB = block_b if B >= block_b else ((B + 7) // 8) * 8
    num_tiles = pl.cdiv(B, TB)
    B_pad = num_tiles * TB
    if B_pad != B:
        x_pad = jnp.pad(x_pad, ((0, B_pad - B), (0, 0)))

    resident = lambda i: (0, 0)  # weights/biases: same block every grid step
    in_specs = [
        pl.BlockSpec((TB, IN_PADDED), lambda i: (i, 0)),       # x tile over batch
        pl.BlockSpec((IN_PADDED, 128), resident),              # w1
        pl.BlockSpec((1, 128), resident),                      # b1
        pl.BlockSpec((128, 64), resident),                     # w2
        pl.BlockSpec((1, 64), resident),                       # b2
        pl.BlockSpec((64, 32), resident),                      # w3
        pl.BlockSpec((1, 32), resident),                       # b3
        pl.BlockSpec((32, HEAD_WIDTH), resident),              # fused head weight
        pl.BlockSpec((1, HEAD_WIDTH), resident),               # fused head bias
    ]
    out_specs = pl.BlockSpec((TB, HEAD_WIDTH), lambda i: (i, 0))

    fused_out = pl.pallas_call(
        simplenet_kernel,
        out_shape=jax.ShapeDtypeStruct((B_pad, HEAD_WIDTH), jnp.float32),
        grid=(num_tiles,),
        in_specs=in_specs,
        out_specs=out_specs,
        compiler_params=pltpu.CompilerParams(
            dimension_semantics=("parallel",),
        ),
    )(x_pad, w1, b1, w2, b2, w3, b3, w_heads, b_heads)

    action_logits = fused_out[:B, :6]
    state_value = fused_out[:B, 6:7]
    return action_logits, state_value


def init_params(key):
    """Deterministic synthetic parameters matching SimpleNet's layer shapes.

    PyTorch nn.Linear(in, out) has weight (out, in); we store the transpose (in, out).
    Biases are stored as (1, out) so they broadcast over the batch inside the kernel.
    """
    sizes = [
        ("1", 85, 128),
        ("2", 128, 64),
        ("3", 64, 32),
        ("a", 32, 6),
        ("v", 32, 1),
    ]
    params = {}
    for name, fan_in, fan_out in sizes:
        key, kw, kb = jax.random.split(key, 3)
        bound = 1.0 / jnp.sqrt(fan_in)  # mimic PyTorch's default uniform init range
        params[f"w{name}"] = jax.random.uniform(
            kw, (fan_in, fan_out), jnp.float32, -bound, bound
        )
        params[f"b{name}"] = jax.random.uniform(
            kb, (1, fan_out), jnp.float32, -bound, bound
        )
    return params


def reference_forward(x, params, *, use_bf16=True):
    """Pure-JAX reference mirroring the kernel's bf16-matmul / f32-epilogue numerics."""
    cd = jnp.bfloat16 if use_bf16 else jnp.float32

    def dense(h, w, b, relu):
        y = jnp.dot(h.astype(cd), w.astype(cd), preferred_element_type=jnp.float32) + b
        return jnp.maximum(y, 0.0) if relu else y

    h = dense(x, params["w1"], params["b1"], True)
    h = dense(h, params["w2"], params["b2"], True)
    h = dense(h, params["w3"], params["b3"], True)
    logits = dense(h, params["wa"], params["ba"], False)
    value = dense(h, params["wv"], params["bv"], False)
    return logits, value


if __name__ == "__main__":
    key = jax.random.PRNGKey(0)
    key, kx1, kx2 = jax.random.split(key, 3)
    params = init_params(key)

    # Small batch (single grid step).
    B = 8
    x_small = jax.random.normal(kx1, (B, IN_FEATURES), jnp.float32)
    logits, value = simplenet_forward(x_small, params)
    jax.block_until_ready((logits, value))
    ref_logits, ref_value = reference_forward(x_small, params)
    assert logits.shape == (B, 6) and value.shape == (B, 1)
    assert jnp.allclose(logits, ref_logits, atol=2e-3, rtol=2e-3)
    assert jnp.allclose(value, ref_value, atol=2e-3, rtol=2e-3)

    # Larger, non-aligned batch to exercise the batch grid + padding path.
    B2 = 600
    x_big = jax.random.normal(kx2, (B2, IN_FEATURES), jnp.float32)
    logits2, value2 = simplenet_forward(x_big, params, block_b=256)
    jax.block_until_ready((logits2, value2))
    ref_logits2, ref_value2 = reference_forward(x_big, params)
    assert logits2.shape == (B2, 6) and value2.shape == (B2, 1)
    assert jnp.allclose(logits2, ref_logits2, atol=2e-3, rtol=2e-3)
    assert jnp.allclose(value2, ref_value2, atol=2e-3, rtol=2e-3)

    print("KERNEL_OK")
</pallas_src>

<mosaic_0001>
module attributes {stable_mosaic.version = 11 : i64} {
  func.func @simplenet_kernel(%arg0: i32, %arg1: memref<8x128xbf16, #tpu.memory_space<vmem>>, %arg2: memref<128x128xbf16, #tpu.memory_space<vmem>>, %arg3: memref<1x128xf32, #tpu.memory_space<vmem>>, %arg4: memref<128x64xbf16, #tpu.memory_space<vmem>>, %arg5: memref<1x64xf32, #tpu.memory_space<vmem>>, %arg6: memref<64x32xbf16, #tpu.memory_space<vmem>>, %arg7: memref<1x32xf32, #tpu.memory_space<vmem>>, %arg8: memref<32x8xbf16, #tpu.memory_space<vmem>>, %arg9: memref<1x8xf32, #tpu.memory_space<vmem>>, %arg10: memref<8x8xf32, #tpu.memory_space<vmem>>) attributes {dimension_semantics = [#tpu.dimension_semantics<parallel>], iteration_bounds = array<i64: 1>, scalar_prefetch = 0 : i64, scratch_operands = 0 : i64, tpu.core_type = #tpu.core_type<tc>, window_params = [{transform_indices = @transform_0, window_bounds = array<i64: 8, 128>}, {pipeline_mode = #tpu.pipeline_mode<synchronous>, transform_indices = @transform_1, window_bounds = array<i64: 128, 128>}, {pipeline_mode = #tpu.pipeline_mode<synchronous>, transform_indices = @transform_2, window_bounds = array<i64: 1, 128>}, {pipeline_mode = #tpu.pipeline_mode<synchronous>, transform_indices = @transform_3, window_bounds = array<i64: 128, 64>}, {pipeline_mode = #tpu.pipeline_mode<synchronous>, transform_indices = @transform_4, window_bounds = array<i64: 1, 64>}, {pipeline_mode = #tpu.pipeline_mode<synchronous>, transform_indices = @transform_5, window_bounds = array<i64: 64, 32>}, {pipeline_mode = #tpu.pipeline_mode<synchronous>, transform_indices = @transform_6, window_bounds = array<i64: 1, 32>}, {pipeline_mode = #tpu.pipeline_mode<synchronous>, transform_indices = @transform_7, window_bounds = array<i64: 32, 8>}, {pipeline_mode = #tpu.pipeline_mode<synchronous>, transform_indices = @transform_8, window_bounds = array<i64: 1, 8>}, {transform_indices = @transform_9, window_bounds = array<i64: 8, 8>}]} {
    %c0 = arith.constant 0 : index
    %c0_0 = arith.constant 0 : index
    %0 = vector.load %arg1[%c0, %c0_0] : memref<8x128xbf16, #tpu.memory_space<vmem>>, vector<8x128xbf16>
    %c0_1 = arith.constant 0 : index
    %c0_2 = arith.constant 0 : index
    %1 = vector.load %arg2[%c0_1, %c0_2] : memref<128x128xbf16, #tpu.memory_space<vmem>>, vector<128x128xbf16>
    %cst = arith.constant dense<0.000000e+00> : vector<8x128xf32>
    %2 = tpu.matmul %0, %1, %cst {dimension_numbers = #tpu.dot_dimension_numbers<[1], [0], [0], [1], [0, 0, 1, 1], [], []>} : vector<8x128xbf16>, vector<128x128xbf16>, vector<8x128xf32> -> vector<8x128xf32>
    %c0_3 = arith.constant 0 : index
    %c0_4 = arith.constant 0 : index
    %3 = vector.load %arg3[%c0_3, %c0_4] : memref<1x128xf32, #tpu.memory_space<vmem>>, vector<1x128xf32>
    %4 = vector.broadcast %3 : vector<1x128xf32> to vector<8x128xf32>
    %5 = arith.addf %2, %4 : vector<8x128xf32>
    %cst_5 = arith.constant 0.000000e+00 : f32
    %6 = vector.broadcast %cst_5 : f32 to vector<8x128xf32>
    %7 = arith.maximumf %5, %6 : vector<8x128xf32>
    %8 = arith.truncf %7 : vector<8x128xf32> to vector<8x128xbf16>
    %c0_6 = arith.constant 0 : index
    %c0_7 = arith.constant 0 : index
    %9 = vector.load %arg4[%c0_6, %c0_7] : memref<128x64xbf16, #tpu.memory_space<vmem>>, vector<128x64xbf16>
    %cst_8 = arith.constant dense<0.000000e+00> : vector<8x64xf32>
    %10 = tpu.matmul %8, %9, %cst_8 {dimension_numbers = #tpu.dot_dimension_numbers<[1], [0], [0], [1], [0, 0, 1, 1], [], []>} : vector<8x128xbf16>, vector<128x64xbf16>, vector<8x64xf32> -> vector<8x64xf32>
    %c0_9 = arith.constant 0 : index
    %c0_10 = arith.constant 0 : index
    %11 = vector.load %arg5[%c0_9, %c0_10] : memref<1x64xf32, #tpu.memory_space<vmem>>, vector<1x64xf32>
    %12 = vector.broadcast %11 : vector<1x64xf32> to vector<8x64xf32>
    %13 = arith.addf %10, %12 : vector<8x64xf32>
    %cst_11 = arith.constant 0.000000e+00 : f32
    %14 = vector.broadcast %cst_11 : f32 to vector<8x64xf32>
    %15 = arith.maximumf %13, %14 : vector<8x64xf32>
    %16 = arith.truncf %15 : vector<8x64xf32> to vector<8x64xbf16>
    %c0_12 = arith.constant 0 : index
    %c0_13 = arith.constant 0 : index
    %17 = vector.load %arg6[%c0_12, %c0_13] : memref<64x32xbf16, #tpu.memory_space<vmem>>, vector<64x32xbf16>
    %cst_14 = arith.constant dense<0.000000e+00> : vector<8x32xf32>
    %18 = tpu.matmul %16, %17, %cst_14 {dimension_numbers = #tpu.dot_dimension_numbers<[1], [0], [0], [1], [0, 0, 1, 1], [], []>} : vector<8x64xbf16>, vector<64x32xbf16>, vector<8x32xf32> -> vector<8x32xf32>
    %c0_15 = arith.constant 0 : index
    %c0_16 = arith.constant 0 : index
    %19 = vector.load %arg7[%c0_15, %c0_16] : memref<1x32xf32, #tpu.memory_space<vmem>>, vector<1x32xf32>
    %20 = vector.broadcast %19 : vector<1x32xf32> to vector<8x32xf32>
    %21 = arith.addf %18, %20 : vector<8x32xf32>
    %cst_17 = arith.constant 0.000000e+00 : f32
    %22 = vector.broadcast %cst_17 : f32 to vector<8x32xf32>
    %23 = arith.maximumf %21, %22 : vector<8x32xf32>
    %24 = arith.truncf %23 : vector<8x32xf32> to vector<8x32xbf16>
    %c0_18 = arith.constant 0 : index
    %c0_19 = arith.constant 0 : index
    %25 = vector.load %arg8[%c0_18, %c0_19] : memref<32x8xbf16, #tpu.memory_space<vmem>>, vector<32x8xbf16>
    %cst_20 = arith.constant dense<0.000000e+00> : vector<8x8xf32>
    %26 = tpu.matmul %24, %25, %cst_20 {dimension_numbers = #tpu.dot_dimension_numbers<[1], [0], [0], [1], [0, 0, 1, 1], [], []>} : vector<8x32xbf16>, vector<32x8xbf16>, vector<8x8xf32> -> vector<8x8xf32>
    %c0_21 = arith.constant 0 : index
    %c0_22 = arith.constant 0 : index
    %27 = vector.load %arg9[%c0_21, %c0_22] : memref<1x8xf32, #tpu.memory_space<vmem>>, vector<1x8xf32>
    %28 = vector.broadcast %27 : vector<1x8xf32> to vector<8x8xf32>
    %29 = arith.addf %26, %28 : vector<8x8xf32>
    %c0_23 = arith.constant 0 : index
    %c0_24 = arith.constant 0 : index
    %30 = vector.load %arg10[%c0_23, %c0_24] : memref<8x8xf32, #tpu.memory_space<vmem>>, vector<8x8xf32>
    tpu.vector_store %arg10[%c0_23, %c0_24], %29 {strides = array<i32>} : memref<8x8xf32, #tpu.memory_space<vmem>>, vector<8x8xf32>,
    return
  }
  func.func @transform_0(%arg0: i32) -> (i32, i32) {
    %c0_i32 = arith.constant 0 : i32
    %c0_i32_0 = arith.constant 0 : i32
    return %arg0, %c0_i32 : i32, i32
  }
  func.func @transform_1(%arg0: i32) -> (i32, i32) {
    %c0_i32 = arith.constant 0 : i32
    %c0_i32_0 = arith.constant 0 : i32
    %c0_i32_1 = arith.constant 0 : i32
    return %c0_i32, %c0_i32_0 : i32, i32
  }
  func.func @transform_2(%arg0: i32) -> (i32, i32) {
    %c0_i32 = arith.constant 0 : i32
    %c0_i32_0 = arith.constant 0 : i32
    %c0_i32_1 = arith.constant 0 : i32
    return %c0_i32, %c0_i32_0 : i32, i32
  }
  func.func @transform_3(%arg0: i32) -> (i32, i32) {
    %c0_i32 = arith.constant 0 : i32
    %c0_i32_0 = arith.constant 0 : i32
    %c0_i32_1 = arith.constant 0 : i32
    return %c0_i32, %c0_i32_0 : i32, i32
  }
  func.func @transform_4(%arg0: i32) -> (i32, i32) {
    %c0_i32 = arith.constant 0 : i32
    %c0_i32_0 = arith.constant 0 : i32
    %c0_i32_1 = arith.constant 0 : i32
    return %c0_i32, %c0_i32_0 : i32, i32
  }
  func.func @transform_5(%arg0: i32) -> (i32, i32) {
    %c0_i32 = arith.constant 0 : i32
    %c0_i32_0 = arith.constant 0 : i32
    %c0_i32_1 = arith.constant 0 : i32
    return %c0_i32, %c0_i32_0 : i32, i32
  }
  func.func @transform_6(%arg0: i32) -> (i32, i32) {
    %c0_i32 = arith.constant 0 : i32
    %c0_i32_0 = arith.constant 0 : i32
    %c0_i32_1 = arith.constant 0 : i32
    return %c0_i32, %c0_i32_0 : i32, i32
  }
  func.func @transform_7(%arg0: i32) -> (i32, i32) {
    %c0_i32 = arith.constant 0 : i32
    %c0_i32_0 = arith.constant 0 : i32
    %c0_i32_1 = arith.constant 0 : i32
    return %c0_i32, %c0_i32_0 : i32, i32
  }
  func.func @transform_8(%arg0: i32) -> (i32, i32) {
    %c0_i32 = arith.constant 0 : i32
    %c0_i32_0 = arith.constant 0 : i32
    %c0_i32_1 = arith.constant 0 : i32
    return %c0_i32, %c0_i32_0 : i32, i32
  }
  func.func @transform_9(%arg0: i32) -> (i32, i32) {
    %c0_i32 = arith.constant 0 : i32
    %c0_i32_0 = arith.constant 0 : i32
    return %arg0, %c0_i32 : i32, i32
  }
}

</mosaic_0001>

<llo_original>
// kernel: tpu_custom_call.1
$region0: #{tpu_custom_call.1}
  #allocation0 [shape = 'u32[]', space=smem, size = 0x4, offset = 0x4, fixed_abs, tag = 'smem constant byte address 0x4 - core index']
  #allocation1 [shape = 'u32[144,128]{1,0:T(1,128)}', space=vmem, size = 0x12000, scoped, tag = 'internal scratch']
  %s0 = inlined_call_operand.vmem [shape: bf16[8,128], index: 0, kind: input, shape index: {}]
  %s1 = inlined_call_operand.vmem [shape: bf16[128,128], index: 1, kind: input, shape index: {}]
  %s2 = inlined_call_operand.vmem [shape: f32[1,128], index: 2, kind: input, shape index: {}]
  %s3 = inlined_call_operand.vmem [shape: bf16[128,64], index: 3, kind: input, shape index: {}]
  %s4 = inlined_call_operand.vmem [shape: f32[1,64], index: 4, kind: input, shape index: {}]
  %s5 = inlined_call_operand.vmem [shape: bf16[64,32], index: 5, kind: input, shape index: {}]
  %s6 = inlined_call_operand.vmem [shape: f32[1,32], index: 6, kind: input, shape index: {}]
  %s7 = inlined_call_operand.vmem [shape: bf16[32,8], index: 7, kind: input, shape index: {}]
  %s8 = inlined_call_operand.vmem [shape: f32[1,8], index: 8, kind: input, shape index: {}]
  %s9 = inlined_call_operand.hbm [shape: f32[8,8], index: 9, kind: output, shape index: {}]
  %s10 = sld [smem:[#allocation0]]
  $region46: #{tpu_custom_call.1} parent=0
    _
  %s12 = ssub.s32 1, %s10
  %s13 = scalar_select 0, %s12, %s10
  $region1: #{tpu_custom_call.1} parent=0
    #allocation2 [shape = 'u8[4096]{0}', space=vmem, size = 0x1000, scoped, tag = 'output window, operand 0, single buffered']
    #allocation3 [shape = 's32[1]{0}', space=sflag, size = 0x4, scoped, tag = 'scoped memory for tpu_custom_call.1']
    %14 = vsyncpa [#allocation3], 0
    // Predicated region
    $region2: #{tpu_custom_call.1} parent=1 // pred_check
      _
    $region3: #{tpu_custom_call.1} parent=1 // pred_check_branch
      %16 = sbr.rel (0) target = $region5
    $region4: #{tpu_custom_call.1} parent=1 // pred_region
      _
    $region5: #{tpu_custom_call.1} parent=1 // pred_fallthru
      _
    // Predicated region
    $region6: #{tpu_custom_call.1} parent=1 // pred_check
      _
    $region7: #{tpu_custom_call.1} parent=1 // pred_check_branch
      %18 = sbr.rel (0) target = $region9
    $region8: #{tpu_custom_call.1} parent=1 // pred_region
      _
    $region9: #{tpu_custom_call.1} parent=1 // pred_fallthru
      _
    // Predicated region
    $region10: #{tpu_custom_call.1} parent=1 // pred_check
      _
    $region11: #{tpu_custom_call.1} parent=1 // pred_check_branch
      %20 = sbr.rel (0) target = $region13
    $region12: #{tpu_custom_call.1} parent=1 // pred_region
      _
    $region13: #{tpu_custom_call.1} parent=1 // pred_fallthru
      _
    // Predicated region
    $region14: #{tpu_custom_call.1} parent=1 // pred_check
      _
    $region15: #{tpu_custom_call.1} parent=1 // pred_check_branch
      %22 = sbr.rel (0) target = $region17
    $region16: #{tpu_custom_call.1} parent=1 // pred_region
      _
    $region17: #{tpu_custom_call.1} parent=1 // pred_fallthru
      _
    // Predicated region
    $region18: #{tpu_custom_call.1} parent=1 // pred_check
      _
    $region19: #{tpu_custom_call.1} parent=1 // pred_check_branch
      %24 = sbr.rel (0) target = $region21
    $region20: #{tpu_custom_call.1} parent=1 // pred_region
      _
    $region21: #{tpu_custom_call.1} parent=1 // pred_fallthru
      _
    // Predicated region
    $region22: #{tpu_custom_call.1} parent=1 // pred_check
      _
    $region23: #{tpu_custom_call.1} parent=1 // pred_check_branch
      %26 = sbr.rel (0) target = $region25
    $region24: #{tpu_custom_call.1} parent=1 // pred_region
      _
    $region25: #{tpu_custom_call.1} parent=1 // pred_fallthru
      _
    // Predicated region
    $region26: #{tpu_custom_call.1} parent=1 // pred_check
      _
    $region27: #{tpu_custom_call.1} parent=1 // pred_check_branch
      %28 = sbr.rel (0) target = $region29
    $region28: #{tpu_custom_call.1} parent=1 // pred_region
      _
    $region29: #{tpu_custom_call.1} parent=1 // pred_fallthru
      _
    // Predicated region
    $region30: #{tpu_custom_call.1} parent=1 // pred_check
      _
    $region31: #{tpu_custom_call.1} parent=1 // pred_check_branch
      %30 = sbr.rel (0) target = $region33
    $region32: #{tpu_custom_call.1} parent=1 // pred_region
      _
    $region33: #{tpu_custom_call.1} parent=1 // pred_fallthru
      _
    // Predicated region
    $region34: #{tpu_custom_call.1} parent=1 // pred_check
      _
    $region35: #{tpu_custom_call.1} parent=1 // pred_check_branch
      %32 = sbr.rel (0) target = $region37
    $region36: #{tpu_custom_call.1} parent=1 // pred_region
      _
    $region37: #{tpu_custom_call.1} parent=1 // pred_fallthru
      _
    %v34 = vld [vmem:[%s0] sm:$0xf]
    %v35 = vld [vmem:[%s1] sm:$0xf]
    %v36 = vld [vmem:[%s1 + $0x4] sm:$0xf]
    %v37 = vld [vmem:[%s1 + $0x8] sm:$0xf]
    %v38 = vld [vmem:[%s1 + $0xc] sm:$0xf]
    %v39 = vld [vmem:[%s1 + $0x10] sm:$0xf]
    %v40 = vld [vmem:[%s1 + $0x14] sm:$0xf]
    %v41 = vld [vmem:[%s1 + $0x18] sm:$0xf]
    %v42 = vld [vmem:[%s1 + $0x1c] sm:$0xf]
    %v43 = vld [vmem:[%s1 + $0x20] sm:$0xf]
    %v44 = vld [vmem:[%s1 + $0x24] sm:$0xf]
    %v45 = vld [vmem:[%s1 + $0x28] sm:$0xf]
    %v46 = vld [vmem:[%s1 + $0x2c] sm:$0xf]
    %v47 = vld [vmem:[%s1 + $0x30] sm:$0xf]
    %v48 = vld [vmem:[%s1 + $0x34] sm:$0xf]
    %v49 = vld [vmem:[%s1 + $0x38] sm:$0xf]
    %v50 = vld [vmem:[%s1 + $0x3c] sm:$0xf]
    %v51 = vld [vmem:[%s2] sm:$0x1]
    %v53 = vlaneseq
    %v54 = vshrl.u32 %v53, 7
    %v55 = vsub.s32 0, %v54
    %v56 = vrot.slane %v51, %v55
    %v74 = vunpack.c.l.b16 %v35
    %v75 = vunpack.c.l.b16 %v36
    %v76 = vunpack.c.l.b16 %v37
    %v77 = vunpack.c.l.b16 %v38
    %v78 = vunpack.c.l.b16 %v39
    %v79 = vunpack.c.l.b16 %v40
    %v80 = vunpack.c.l.b16 %v41
    %v81 = vunpack.c.l.b16 %v42
    %v82 = vunpack.c.l.b16 %v43
    %v83 = vunpack.c.l.b16 %v44
    %v84 = vunpack.c.l.b16 %v45
    %v85 = vunpack.c.l.b16 %v46
    %v86 = vunpack.c.l.b16 %v47
    %v87 = vunpack.c.l.b16 %v48
    %v88 = vunpack.c.l.b16 %v49
    %v89 = vunpack.c.l.b16 %v50
    %v90 = vpack.c.b16 %v75, %v74
    %v91 = vpack.c.b16 %v77, %v76
    %v92 = vpack.c.b16 %v79, %v78
    %v93 = vpack.c.b16 %v81, %v80
    %v94 = vpack.c.b16 %v83, %v82
    %v95 = vpack.c.b16 %v85, %v84
    %v96 = vpack.c.b16 %v87, %v86
    %v97 = vpack.c.b16 %v89, %v88
    %106 = vmatprep.subr.bf16.mxu0 0
    %107 = vmatpush1.bf16.msra.mxu0 %v90
    %108 = vmatprep.subr.bf16.mxu0 0
    %109 = vmatpush1.bf16.msra.mxu0 %v91
    %110 = vmatprep.subr.bf16.mxu0 0
    %111 = vmatpush1.bf16.msra.mxu0 %v92
    %112 = vmatprep.subr.bf16.mxu0 0
    %113 = vmatpush1.bf16.msra.mxu0 %v93
    %114 = vmatprep.subr.bf16.mxu0 0
    %115 = vmatpush1.bf16.msra.mxu0 %v94
    %116 = vmatprep.subr.bf16.mxu0 0
    %117 = vmatpush1.bf16.msra.mxu0 %v95
    %118 = vmatprep.subr.bf16.mxu0 0
    %119 = vmatpush1.bf16.msra.mxu0 %v96
    %120 = vmatprep.subr.bf16.mxu0 0
    %121 = vmatpush1.bf16.msra.mxu0 %v97
    %122 = vmatprep.subr.bf16.mxu0 0
    %123 = vmatpush1.bf16.msra.mxu0 0
    %124 = vmatprep.subr.bf16.mxu0 0
    %125 = vmatpush1.bf16.msra.mxu0 0
    %126 = vmatprep.subr.bf16.mxu0 0
    %127 = vmatpush1.bf16.msra.mxu0 0
    %128 = vmatprep.subr.bf16.mxu0 0
    %129 = vmatpush1.bf16.msra.mxu0 0
    %130 = vmatprep.subr.bf16.mxu0 0
    %131 = vmatpush1.bf16.msra.mxu0 0
    %132 = vmatprep.subr.bf16.mxu0 0
    %133 = vmatpush1.bf16.msra.mxu0 0
    %134 = vmatprep.subr.bf16.mxu0 0
    %135 = vmatpush1.bf16.msra.mxu0 0
    %136 = vmatprep.subr.bf16.mxu0 0
    %137 = vmatpush1.bf16.msra.mxu0 0
    %138 = vmatprep.mubr.bf16.mxu0 0
    %139 = vmatmul.mubr.bf16.gmra.mrb[0].mxu0 %v34
    %v140 = vpop.f32.mrb[0].mxu0
    %v141 = vadd.f32 %v56, %v140
    %v142 = vpop.f32.mrb[0].mxu0
    %v143 = vpop.f32.mrb[0].mxu0
    %v144 = vpop.f32.mrb[0].mxu0
    %145 = vdwg.mxu0
    %v146 = vmax.f32 %v141, 0.0
    %v147 = vpack.c.bf16 %v146, %v146
    %v148 = vld [vmem:[%s3] sm:$0xf]
    %v149 = vld [vmem:[%s3 + $0x4] sm:$0xf]
    %v150 = vld [vmem:[%s3 + $0x8] sm:$0xf]
    %v151 = vld [vmem:[%s3 + $0xc] sm:$0xf]
    %v152 = vld [vmem:[%s3 + $0x10] sm:$0xf]
    %v153 = vld [vmem:[%s3 + $0x14] sm:$0xf]
    %v154 = vld [vmem:[%s3 + $0x18] sm:$0xf]
    %v155 = vld [vmem:[%s3 + $0x1c] sm:$0xf]
    %v156 = vld [vmem:[%s3 + $0x20] sm:$0xf]
    %v157 = vld [vmem:[%s3 + $0x24] sm:$0xf]
    %v158 = vld [vmem:[%s3 + $0x28] sm:$0xf]
    %v159 = vld [vmem:[%s3 + $0x2c] sm:$0xf]
    %v160 = vld [vmem:[%s3 + $0x30] sm:$0xf]
    %v161 = vld [vmem:[%s3 + $0x34] sm:$0xf]
    %v162 = vld [vmem:[%s3 + $0x38] sm:$0xf]
    %v163 = vld [vmem:[%s3 + $0x3c] sm:$0xf]
    %v164 = vld [vmem:[%s4] sm:$0x1]
    %v166 = vlaneseq
    %v167 = vshrl.u32 %v166, 7
    %v168 = vsub.s32 0, %v167
    %v169 = vrot.slane %v164, %v168
    %v187 = vunpack.c.l.b16 %v148
    %v188 = vunpack.c.l.b16 %v149
    %v189 = vunpack.c.l.b16 %v150
    %v190 = vunpack.c.l.b16 %v151
    %v191 = vunpack.c.l.b16 %v152
    %v192 = vunpack.c.l.b16 %v153
    %v193 = vunpack.c.l.b16 %v154
    %v194 = vunpack.c.l.b16 %v155
    %v195 = vunpack.c.l.b16 %v156
    %v196 = vunpack.c.l.b16 %v157
    %v197 = vunpack.c.l.b16 %v158
    %v198 = vunpack.c.l.b16 %v159
    %v199 = vunpack.c.l.b16 %v160
    %v200 = vunpack.c.l.b16 %v161
    %v201 = vunpack.c.l.b16 %v162
    %v202 = vunpack.c.l.b16 %v163
    %v203 = vpack.c.b16 %v188, %v187
    %v204 = vpack.c.b16 %v190, %v189
    %v205 = vpack.c.b16 %v192, %v191
    %v206 = vpack.c.b16 %v194, %v193
    %v207 = vpack.c.b16 %v196, %v195
    %v208 = vpack.c.b16 %v198, %v197
    %v209 = vpack.c.b16 %v200, %v199
    %v210 = vpack.c.b16 %v202, %v201
    %219 = vmatprep.subr.bf16.mxu0 0
    %220 = vmatpush1.bf16.msra.mxu0 %v203
    %221 = vmatprep.subr.bf16.mxu0 0
    %222 = vmatpush1.bf16.msra.mxu0 %v204
    %223 = vmatprep.subr.bf16.mxu0 0
    %224 = vmatpush1.bf16.msra.mxu0 %v205
    %225 = vmatprep.subr.bf16.mxu0 0
    %226 = vmatpush1.bf16.msra.mxu0 %v206
    %227 = vmatprep.subr.bf16.mxu0 0
    %228 = vmatpush1.bf16.msra.mxu0 %v207
    %229 = vmatprep.subr.bf16.mxu0 0
    %230 = vmatpush1.bf16.msra.mxu0 %v208
    %231 = vmatprep.subr.bf16.mxu0 0
    %232 = vmatpush1.bf16.msra.mxu0 %v209
    %233 = vmatprep.subr.bf16.mxu0 0
    %234 = vmatpush1.bf16.msra.mxu0 %v210
    %235 = vmatprep.subr.bf16.mxu0 0
    %236 = vmatpush1.bf16.msra.mxu0 0
    %237 = vmatprep.subr.bf16.mxu0 0
    %238 = vmatpush1.bf16.msra.mxu0 0
    %239 = vmatprep.subr.bf16.mxu0 0
    %240 = vmatpush1.bf16.msra.mxu0 0
    %241 = vmatprep.subr.bf16.mxu0 0
    %242 = vmatpush1.bf16.msra.mxu0 0
    %243 = vmatprep.subr.bf16.mxu0 0
    %244 = vmatpush1.bf16.msra.mxu0 0
    %245 = vmatprep.subr.bf16.mxu0 0
    %246 = vmatpush1.bf16.msra.mxu0 0
    %247 = vmatprep.subr.bf16.mxu0 0
    %248 = vmatpush1.bf16.msra.mxu0 0
    %249 = vmatprep.subr.bf16.mxu0 0
    %250 = vmatpush1.bf16.msra.mxu0 0
    %251 = vmatprep.mubr.bf16.mxu0 0
    %252 = vmatmul.mubr.bf16.gmra.mrb[0].mxu0 %v147
    %v253 = vpop.f32.mrb[0].mxu0
    %v254 = vadd.f32 %v169, %v253
    %v255 = vpop.f32.mrb[0].mxu0
    %v256 = vpop.f32.mrb[0].mxu0
    %v257 = vpop.f32.mrb[0].mxu0
    %258 = vdwg.mxu0
    %v259 = vmax.f32 %v254, 0.0
    %v260 = vpack.c.bf16 %v259, %v259
    %v261 = vld [vmem:[%s5] sm:$0xf]
    %v262 = vld [vmem:[%s5 + $0x4] sm:$0xf]
    %v263 = vld [vmem:[%s5 + $0x8] sm:$0xf]
    %v264 = vld [vmem:[%s5 + $0xc] sm:$0xf]
    %v265 = vld [vmem:[%s5 + $0x10] sm:$0xf]
    %v266 = vld [vmem:[%s5 + $0x14] sm:$0xf]
    %v267 = vld [vmem:[%s5 + $0x18] sm:$0xf]
    %v268 = vld [vmem:[%s5 + $0x1c] sm:$0xf]
    %v269 = vld [vmem:[%s6] sm:$0x1]
    %v271 = vlaneseq
    %v272 = vshrl.u32 %v271, 7
    %v273 = vsub.s32 0, %v272
    %v274 = vrot.slane %v269, %v273
    %v284 = vunpack.c.l.b16 %v261
    %v285 = vunpack.c.l.b16 %v262
    %v286 = vunpack.c.l.b16 %v263
    %v287 = vunpack.c.l.b16 %v264
    %v288 = vunpack.c.l.b16 %v265
    %v289 = vunpack.c.l.b16 %v266
    %v290 = vunpack.c.l.b16 %v267
    %v291 = vunpack.c.l.b16 %v268
    %v292 = vpack.c.b16 %v285, %v284
    %v293 = vpack.c.b16 %v287, %v286
    %v294 = vpack.c.b16 %v289, %v288
    %v295 = vpack.c.b16 %v291, %v290
    %vm300 = vcmask 523264
    %v302 = vsel %vm300, %v260, 0
    %304 = vmatprep.subr.bf16.mxu0 0
    %305 = vmatpush1.bf16.msra.mxu0 %v292
    %306 = vmatprep.subr.bf16.mxu0 0
    %307 = vmatpush1.bf16.msra.mxu0 %v293
    %308 = vmatprep.subr.bf16.mxu0 0
    %309 = vmatpush1.bf16.msra.mxu0 %v294
    %310 = vmatprep.subr.bf16.mxu0 0
    %311 = vmatpush1.bf16.msra.mxu0 %v295
    %312 = vmatprep.subr.bf16.mxu0 0
    %313 = vmatpush1.bf16.msra.mxu0 0
    %314 = vmatprep.subr.bf16.mxu0 0
    %315 = vmatpush1.bf16.msra.mxu0 0
    %316 = vmatprep.subr.bf16.mxu0 0
    %317 = vmatpush1.bf16.msra.mxu0 0
    %318 = vmatprep.subr.bf16.mxu0 0
    %319 = vmatpush1.bf16.msra.mxu0 0
    %320 = vmatprep.subr.bf16.mxu0 0
    %321 = vmatpush1.bf16.msra.mxu0 0
    %322 = vmatprep.subr.bf16.mxu0 0
    %323 = vmatpush1.bf16.msra.mxu0 0
    %324 = vmatprep.subr.bf16.mxu0 0
    %325 = vmatpush1.bf16.msra.mxu0 0
    %326 = vmatprep.subr.bf16.mxu0 0
    %327 = vmatpush1.bf16.msra.mxu0 0
    %328 = vmatprep.subr.bf16.mxu0 0
    %329 = vmatpush1.bf16.msra.mxu0 0
    %330 = vmatprep.subr.bf16.mxu0 0
    %331 = vmatpush1.bf16.msra.mxu0 0
    %332 = vmatprep.subr.bf16.mxu0 0
    %333 = vmatpush1.bf16.msra.mxu0 0
    %334 = vmatprep.subr.bf16.mxu0 0
    %335 = vmatpush1.bf16.msra.mxu0 0
    %336 = vmatprep.mubr.bf16.mxu0 0
    %337 = vmatmul.mubr.bf16.gmra.mrb[0].mxu0 %v302
    %v338 = vpop.f32.mrb[0].mxu0
    %v339 = vadd.f32 %v274, %v338
    %v340 = vpop.f32.mrb[0].mxu0
    %v341 = vpop.f32.mrb[0].mxu0
    %v342 = vpop.f32.mrb[0].mxu0
    %343 = vdwg.mxu0
    %v344 = vmax.f32 %v339, 0.0
    %v345 = vpack.c.bf16 %v344, %v344
    %v346 = vld [vmem:[%s7] sm:$0xf]
    %v347 = vld [vmem:[%s7 + $0x4] sm:$0xf]
    %v348 = vld [vmem:[%s7 + $0x8] sm:$0xf]
    %v349 = vld [vmem:[%s7 + $0xc] sm:$0xf]
    %v350 = vld [vmem:[%s8] sm:$0x1]
    %v352 = vlaneseq
    %v353 = vshrl.u32 %v352, 7
    %v354 = vsub.s32 0, %v353
    %v355 = vrot.slane %v350, %v354
    %v361 = vunpack.c.l.b16 %v346
    %v362 = vunpack.c.l.b16 %v347
    %v363 = vunpack.c.l.b16 %v348
    %v364 = vunpack.c.l.b16 %v349
    %v365 = vpack.c.b16 %v362, %v361
    %v366 = vpack.c.b16 %v364, %v363
    %vm369 = vcmask 261120
    %v371 = vsel %vm369, %v345, 0
    %373 = vmatprep.subr.bf16.mxu0 0
    %374 = vmatpush1.bf16.msra.mxu0 %v365
    %375 = vmatprep.subr.bf16.mxu0 0
    %376 = vmatpush1.bf16.msra.mxu0 %v366
    %377 = vmatprep.subr.bf16.mxu0 0
    %378 = vmatpush1.bf16.msra.mxu0 0
    %379 = vmatprep.subr.bf16.mxu0 0
    %380 = vmatpush1.bf16.msra.mxu0 0
    %381 = vmatprep.subr.bf16.mxu0 0
    %382 = vmatpush1.bf16.msra.mxu0 0
    %383 = vmatprep.subr.bf16.mxu0 0
    %384 = vmatpush1.bf16.msra.mxu0 0
    %385 = vmatprep.subr.bf16.mxu0 0
    %386 = vmatpush1.bf16.msra.mxu0 0
    %387 = vmatprep.subr.bf16.mxu0 0
    %388 = vmatpush1.bf16.msra.mxu0 0
    %389 = vmatprep.subr.bf16.mxu0 0
    %390 = vmatpush1.bf16.msra.mxu0 0
    %391 = vmatprep.subr.bf16.mxu0 0
    %392 = vmatpush1.bf16.msra.mxu0 0
    %393 = vmatprep.subr.bf16.mxu0 0
    %394 = vmatpush1.bf16.msra.mxu0 0
    %395 = vmatprep.subr.bf16.mxu0 0
    %396 = vmatpush1.bf16.msra.mxu0 0
    %397 = vmatprep.subr.bf16.mxu0 0
    %398 = vmatpush1.bf16.msra.mxu0 0
    %399 = vmatprep.subr.bf16.mxu0 0
    %400 = vmatpush1.bf16.msra.mxu0 0
    %401 = vmatprep.subr.bf16.mxu0 0
    %402 = vmatpush1.bf16.msra.mxu0 0
    %403 = vmatprep.subr.bf16.mxu0 0
    %404 = vmatpush1.bf16.msra.mxu0 0
    %405 = vmatprep.mubr.bf16.mxu0 0
    %406 = vmatmul.mubr.bf16.gmra.mrb[0].mxu0 %v371
    %v407 = vpop.f32.mrb[0].mxu0
    %v408 = vadd.f32 %v355, %v407
    %v409 = vpop.f32.mrb[0].mxu0
    %v410 = vpop.f32.mrb[0].mxu0
    %v411 = vpop.f32.mrb[0].mxu0
    %412 = vdwg.mxu0
    %vm413 = vcmask 64512
    %414 = vst.msk [vmem:[#allocation2] sm:$0xff] %vm413, %v408
    // Predicated region
    $region38: #{tpu_custom_call.1} parent=1 // pred_check
      _
    $region39: #{tpu_custom_call.1} parent=1 // pred_check_branch
      %416 = sbr.rel (0) target = $region41
    $region40: #{tpu_custom_call.1} parent=1 // pred_region
      %s418 = ssub.s32 128, 128
      %419 = vsyncadd [#allocation3], %s418
      %s421 = sshll.u32 [#allocation2], 4
      %s422 = int_to_ptr.vmem [resolvable:$true] %s421
      %424 = dma.vmem_to_hbm [thread:$0]  %s422, 128, %s9, [#allocation3]
    $region41: #{tpu_custom_call.1} parent=1 // pred_fallthru
      _
    // Predicated region
    $region42: #{tpu_custom_call.1} parent=1 // pred_check
      _
    $region43: #{tpu_custom_call.1} parent=1 // pred_check_branch
      %426 = sbr.rel (0) target = $region45
    $region44: #{tpu_custom_call.1} parent=1 // pred_region
      %427 = dma.done [#allocation3], 128
    $region45: #{tpu_custom_call.1} parent=1 // pred_fallthru
      _
    %428 = vsyncpa [#allocation3], 1

</llo_original>
